<compile_context>
chip_gen: v7x
topology: tpu7x:2x2x1
jax: 0.10.0
libtpu: 0.0.40
codegen_flags: <defaults>
</compile_context>

<pallas_src>
import functools

import numpy as np
import jax
import jax.numpy as jnp
from jax.experimental import pallas as pl
from jax.experimental.pallas import tpu as pltpu


# ----------------------------------------------------------------------------
# Faithful port of the reference helper (deterministic, no learned params).
# ----------------------------------------------------------------------------
def rotate_matrix(h, w, k=3):
    vec = np.ones([w * k], dtype=np.float32)
    matrix_out = np.zeros((h * w, h * w))
    i = 0
    while (i + k + 1) * w <= h * w:
        matrix_out[i, i * w:(i + k) * w] = vec
        i += 1
    for i in range(1, k - 1):
        for j in range(h * w):
            if j // (i + 2) == 0:
                matrix_out[-i, j:j + 2] = 1
    return matrix_out


# ----------------------------------------------------------------------------
# Fold fft -> einsum -> ifft -> .real into one REAL matrix M (n, T) such that,
# for REAL x:  Re(ifft(einsum('bix,io->box', fft(x, axis=1), W), axis=1, n=n))
#              == einsum('jt,btc->bjc', M, x)
# Host-side numpy (float64/complex128), run once at prep time.
# ----------------------------------------------------------------------------
def _fft_block_real_matrix(W, T, n):
    W = np.asarray(W)
    modes1, modes2 = W.shape
    assert modes1 == T, "time length must equal modes1 (as in the torch model)"
    t = np.arange(T)
    i = np.arange(modes1)
    DFT = np.exp(-2j * np.pi * np.outer(i, t) / T)            # (modes1, T)
    m = min(modes2, n)                                        # ifft trims/pads to n
    j = np.arange(n)
    o = np.arange(m)
    IDFT = np.exp(2j * np.pi * np.outer(j, o) / n) / n        # (n, m)
    Mc = IDFT @ W[:, :m].T @ DFT                              # (n, T) complex
    return np.real(Mc)


# ----------------------------------------------------------------------------
# One-time parameter preprocessing (call ONCE; not in the per-forward path).
# Produces the two constant kernel operands:
#   rhs = [W_mid | W_lin]  (N, N+PC)   and   m2 = M2_big (N, PC)
# ----------------------------------------------------------------------------
def prepare_ft_matrix_net_params(params, channels, pred_num, F_channels,
                                 weight_dtype=jnp.bfloat16):
    T, C, P = channels, F_channels, pred_num
    N, PC = T * C, P * C
    eye_c = np.eye(C)

    # FFT blocks folded to real time-axis matrices, lifted to flat layout.
    M1 = _fft_block_real_matrix(params["wfft1"], T, channels)            # (T, T)
    M2 = _fft_block_real_matrix(params["wfft_out"], channels, pred_num)  # (P, T)
    M1_big = np.kron(M1.T, eye_c)                                        # (N, N)
    M2_big = np.kron(M2.T, eye_c)                                        # (N, PC)

    # A = rotate_matrix * weights_1 (constant product).
    A = np.asarray(params["rot_matrix"], np.float64) * np.asarray(params["w1"], np.float64)

    # Centering  xc = x - x[:, -1:, :]   <=>   xc_flat = x_flat @ Cmat
    e_last = np.zeros((T, 1))
    e_last[T - 1, 0] = 1.0
    Cmat = np.kron(np.eye(T) - e_last @ np.ones((1, T)), eye_c)          # (N, N)
    # Residual  + x[:, -1:, :] (broadcast over pred_num)  <=>  x_flat @ L
    L = np.kron(e_last @ np.ones((1, P)), eye_c)                         # (N, PC)

    W_mid = Cmat @ A                                                     # (N, N)
    W_lin = Cmat @ M1_big @ M2_big + L                                   # (N, PC)

    rhs = jnp.asarray(np.concatenate([W_mid, W_lin], axis=1), dtype=weight_dtype)
    m2 = jnp.asarray(M2_big, dtype=weight_dtype)
    return {"rhs": rhs, "m2": m2}


# ----------------------------------------------------------------------------
# Pallas kernel: the whole forward hot path.
#   x_ref   : (TB, N)       raw flattened input (already in weight dtype)
#   rhs_ref : (N, N+PC)     [W_mid | W_lin]  constants
#   m2_ref  : (N, PC)       M2_big
#   out_ref : (TB, PC)      output
# ----------------------------------------------------------------------------
def _ft_matrix_net_kernel(n_mid, x_ref, rhs_ref, m2_ref, out_ref):
    x = x_ref[...]                                                  # (TB, N), no cast
    # One 256-wide MXU pass: [mid | lin] = x @ [W_mid | W_lin], f32 accumulate.
    h = jnp.dot(x, rhs_ref[...], preferred_element_type=jnp.float32)   # (TB, N+PC)
    mid = h[:, :n_mid]                                              # relu branch (f32)
    lin = h[:, n_mid:]                                              # linear + residual (f32)
    relu_mid = jnp.maximum(mid, 0.0)                                # f32 VPU
    out = lin + jnp.dot(relu_mid.astype(m2_ref.dtype), m2_ref[...],
                        preferred_element_type=jnp.float32)
    out_ref[...] = out.astype(out_ref.dtype)


def _pick_batch_tile(B):
    # Fixed-size batch tiles, multiples of 16 so both f32 and bf16 activations
    # are sublane-aligned ((8,128) / (16,128)) without masked loads/stores.
    if B >= 1024:
        return 512                      # sweep 256-1024; >=2 tiles -> v7x dual-TC
    if B >= 32:
        half = -(-B // 2)               # force >=2 grid steps when it is cheap
        return min(512, -(-half // 16) * 16)
    return 16


def ft_matrix_net_forward(x, prepped, channels, pred_num, F_channels,
                          out_dtype=jnp.float32):
    B, T, C = x.shape
    assert T == channels and C == F_channels
    N = T * C
    PC = pred_num * C

    rhs = prepped["rhs"]
    m2 = prepped["m2"]
    act_dtype = rhs.dtype   # activations travel in the weight dtype (bf16 fast path)

    x_flat = x.reshape(B, N).astype(act_dtype)

    # cdiv grid with zero-padded batch tail (no TB=B fallback).
    TB = _pick_batch_tile(B)
    B_pad = -(-B // TB) * TB
    if B_pad != B:
        x_flat = jnp.pad(x_flat, ((0, B_pad - B), (0, 0)))
    grid = (B_pad // TB,)

    weight_bytes = (rhs.size * np.dtype(rhs.dtype).itemsize
                    + m2.size * np.dtype(m2.dtype).itemsize)
    cost = pl.CostEstimate(
        flops=int(2 * B_pad * N * (N + 2 * PC)),
        transcendentals=0,
        bytes_accessed=int(B_pad * N * np.dtype(act_dtype).itemsize
                           + B_pad * PC * np.dtype(out_dtype).itemsize
                           + weight_bytes),
    )

    out_flat = pl.pallas_call(
        functools.partial(_ft_matrix_net_kernel, N),
        out_shape=jax.ShapeDtypeStruct((B_pad, PC), out_dtype),
        grid=grid,
        in_specs=[
            pl.BlockSpec((TB, N), lambda i: (i, 0)),
            # Constant index maps: weights stay resident across grid steps.
            pl.BlockSpec((N, N + PC), lambda i: (0, 0)),
            pl.BlockSpec((N, PC), lambda i: (0, 0)),
        ],
        out_specs=pl.BlockSpec((TB, PC), lambda i: (i, 0)),
        compiler_params=pltpu.CompilerParams(dimension_semantics=("parallel",)),
        cost_estimate=cost,
    )(x_flat, rhs, m2)

    return out_flat[:B].reshape(B, pred_num, C)


# ----------------------------------------------------------------------------
# Pure-numpy reference mirroring the torch forward (for correctness check).
# ----------------------------------------------------------------------------
def ft_matrix_net_reference(x, params, channels, pred_num):
    x = np.asarray(x, dtype=np.float64)
    rot = np.asarray(params["rot_matrix"], np.float64)
    w1 = np.asarray(params["w1"], np.float64)

    x_last = x[:, -1:, :]
    xc = x - x_last
    B, T, C = xc.shape
    mid = (xc.reshape(B, -1) @ (rot * w1)).reshape(B, T, C)

    def fft_block(z, W, n):
        z_ft = np.fft.fft(z, axis=1)
        z_ft = np.einsum('bix,io->box', z_ft, np.asarray(W))
        return np.real(np.fft.ifft(z_ft, axis=1, n=n))

    out1 = fft_block(xc, params["wfft1"], channels)
    blk = out1 + np.maximum(mid, 0.0)
    out = fft_block(blk, params["wfft_out"], pred_num)
    return (out + x_last).astype(np.float32)


if __name__ == "__main__":
    # Module config: FT_matrix_Net(channels, pred_num, F_channels)
    channels, pred_num, F_channels = 8, 8, 16
    B = 2
    T, C = channels, F_channels
    N = T * C

    key = jax.random.PRNGKey(0)
    kx, kw1, kf1r, kf1i, kfor, kfoi = jax.random.split(key, 6)

    # Input implied by forward: (B, T=channels, C=F_channels)
    x = jax.random.normal(kx, (B, T, C), dtype=jnp.float32)

    # Deterministic parameter init matching __init__ shapes / distributions.
    # Complex FFT weights are assembled on host (no TPU complex arrays needed).
    scale = 1.0 / (channels * channels)
    wfft1 = (scale * (np.asarray(jax.random.uniform(kf1r, (channels, channels), dtype=jnp.float32))
                      + 1j * np.asarray(jax.random.uniform(kf1i, (channels, channels), dtype=jnp.float32)))
             ).astype(np.complex64)
    wfft_out = (scale * (np.asarray(jax.random.uniform(kfor, (channels, channels), dtype=jnp.float32))
                         + 1j * np.asarray(jax.random.uniform(kfoi, (channels, channels), dtype=jnp.float32)))
                ).astype(np.complex64)
    w1 = np.asarray(jax.random.uniform(kw1, (N, N), dtype=jnp.float32))
    rot = rotate_matrix(channels, F_channels, k=2).astype(np.float32)

    params = {"rot_matrix": rot, "w1": w1, "wfft1": wfft1, "wfft_out": wfft_out}

    ref = ft_matrix_net_reference(np.asarray(x), params, channels, pred_num)

    # --- f32-weight variant: validates the constant folding. ---------------
    prepped_f32 = prepare_ft_matrix_net_params(
        params, channels, pred_num, F_channels, weight_dtype=jnp.float32)
    out_f32 = jax.block_until_ready(
        ft_matrix_net_forward(x, prepped_f32, channels, pred_num, F_channels))
    assert out_f32.shape == (B, pred_num, F_channels)
    np.testing.assert_allclose(np.asarray(out_f32), ref, rtol=2e-2, atol=2e-2)

    # --- bf16 fast path (bf16 weights + bf16 activations, f32 output). -----
    prepped_bf16 = prepare_ft_matrix_net_params(
        params, channels, pred_num, F_channels, weight_dtype=jnp.bfloat16)
    out_bf16 = jax.block_until_ready(
        ft_matrix_net_forward(x, prepped_bf16, channels, pred_num, F_channels))
    np.testing.assert_allclose(np.asarray(out_bf16), ref, rtol=5e-2, atol=5e-2)

    # bf16 output as well (halves write traffic; kernel is HBM-bound).
    out_bf16_io = jax.block_until_ready(
        ft_matrix_net_forward(x, prepped_bf16, channels, pred_num, F_channels,
                              out_dtype=jnp.bfloat16))
    np.testing.assert_allclose(np.asarray(out_bf16_io, dtype=np.float32), ref,
                               rtol=6e-2, atol=6e-2)

    # --- Larger, non-multiple-of-tile batch: exercises the cdiv/padded grid
    #     (2 grid steps, padded tail sliced off afterwards). -----------------
    B2 = 100
    x2 = jax.random.normal(jax.random.PRNGKey(1), (B2, T, C), dtype=jnp.float32)
    ref2 = ft_matrix_net_reference(np.asarray(x2), params, channels, pred_num)
    out2 = jax.block_until_ready(
        ft_matrix_net_forward(x2, prepped_bf16, channels, pred_num, F_channels))
    assert out2.shape == (B2, pred_num, F_channels)
    np.testing.assert_allclose(np.asarray(out2), ref2, rtol=5e-2, atol=5e-2)

    print("KERNEL_OK")
</pallas_src>

<mosaic_0001>
module attributes {stable_mosaic.version = 11 : i64} {
  func.func @_ft_matrix_net_kernel(%arg0: i32, %arg1: memref<16x128xf32, #tpu.memory_space<vmem>>, %arg2: memref<128x256xf32, #tpu.memory_space<vmem>>, %arg3: memref<128x128xf32, #tpu.memory_space<vmem>>, %arg4: memref<16x128xf32, #tpu.memory_space<vmem>>) attributes {dimension_semantics = [#tpu.dimension_semantics<parallel>], iteration_bounds = array<i64: 1>, scalar_prefetch = 0 : i64, scratch_operands = 0 : i64, tpu.core_type = #tpu.core_type<tc>, window_params = [{transform_indices = @transform_0, window_bounds = array<i64: 16, 128>}, {pipeline_mode = #tpu.pipeline_mode<synchronous>, transform_indices = @transform_1, window_bounds = array<i64: 128, 256>}, {pipeline_mode = #tpu.pipeline_mode<synchronous>, transform_indices = @transform_2, window_bounds = array<i64: 128, 128>}, {transform_indices = @transform_3, window_bounds = array<i64: 16, 128>}]} {
    %c0 = arith.constant 0 : index
    %c0_0 = arith.constant 0 : index
    %0 = vector.load %arg1[%c0, %c0_0] : memref<16x128xf32, #tpu.memory_space<vmem>>, vector<16x128xf32>
    %c0_1 = arith.constant 0 : index
    %c0_2 = arith.constant 0 : index
    %1 = vector.load %arg2[%c0_1, %c0_2] : memref<128x256xf32, #tpu.memory_space<vmem>>, vector<128x256xf32>
    %cst = arith.constant dense<0.000000e+00> : vector<16x256xf32>
    %2 = tpu.matmul %0, %1, %cst {dimension_numbers = #tpu.dot_dimension_numbers<[1], [0], [0], [1], [0, 0, 1, 1], [], []>} : vector<16x128xf32>, vector<128x256xf32>, vector<16x256xf32> -> vector<16x256xf32>
    %3 = vector.extract_strided_slice %2 {offsets = [0, 0], sizes = [16, 128], strides = [1, 1]} : vector<16x256xf32> to vector<16x128xf32>
    %4 = vector.extract_strided_slice %2 {offsets = [0, 128], sizes = [16, 128], strides = [1, 1]} : vector<16x256xf32> to vector<16x128xf32>
    %cst_3 = arith.constant 0.000000e+00 : f32
    %5 = vector.broadcast %cst_3 : f32 to vector<16x128xf32>
    %6 = arith.maximumf %3, %5 : vector<16x128xf32>
    %c0_4 = arith.constant 0 : index
    %c0_5 = arith.constant 0 : index
    %7 = vector.load %arg3[%c0_4, %c0_5] : memref<128x128xf32, #tpu.memory_space<vmem>>, vector<128x128xf32>
    %cst_6 = arith.constant dense<0.000000e+00> : vector<16x128xf32>
    %8 = tpu.matmul %6, %7, %cst_6 {dimension_numbers = #tpu.dot_dimension_numbers<[1], [0], [0], [1], [0, 0, 1, 1], [], []>} : vector<16x128xf32>, vector<128x128xf32>, vector<16x128xf32> -> vector<16x128xf32>
    %9 = arith.addf %4, %8 : vector<16x128xf32>
    %c0_7 = arith.constant 0 : index
    %c0_8 = arith.constant 0 : index
    %10 = vector.load %arg4[%c0_7, %c0_8] : memref<16x128xf32, #tpu.memory_space<vmem>>, vector<16x128xf32>
    tpu.vector_store %arg4[%c0_7, %c0_8], %9 {strides = array<i32>} : memref<16x128xf32, #tpu.memory_space<vmem>>, vector<16x128xf32>,
    return
  }
  func.func @transform_0(%arg0: i32) -> (i32, i32) {
    %c0_i32 = arith.constant 0 : i32
    %c0_i32_0 = arith.constant 0 : i32
    return %arg0, %c0_i32 : i32, i32
  }
  func.func @transform_1(%arg0: i32) -> (i32, i32) {
    %c0_i32 = arith.constant 0 : i32
    %c0_i32_0 = arith.constant 0 : i32
    %c0_i32_1 = arith.constant 0 : i32
    return %c0_i32, %c0_i32_0 : i32, i32
  }
  func.func @transform_2(%arg0: i32) -> (i32, i32) {
    %c0_i32 = arith.constant 0 : i32
    %c0_i32_0 = arith.constant 0 : i32
    %c0_i32_1 = arith.constant 0 : i32
    return %c0_i32, %c0_i32_0 : i32, i32
  }
  func.func @transform_3(%arg0: i32) -> (i32, i32) {
    %c0_i32 = arith.constant 0 : i32
    %c0_i32_0 = arith.constant 0 : i32
    return %arg0, %c0_i32 : i32, i32
  }
}

</mosaic_0001>

<llo_original>
// kernel: tpu_custom_call.1
$region0: #{tpu_custom_call.1}
  #allocation0 [shape = 'u32[]', space=smem, size = 0x4, offset = 0x4, fixed_abs, tag = 'smem constant byte address 0x4 - core index']
  #allocation1 [shape = 'u32[144,128]{1,0:T(1,128)}', space=vmem, size = 0x12000, scoped, tag = 'internal scratch']
  %s0 = inlined_call_operand.hbm [shape: f32[16,128], index: 0, kind: input, shape index: {}]
  %s1 = inlined_call_operand.hbm [shape: f32[128,256], index: 1, kind: input, shape index: {}]
  %s2 = inlined_call_operand.hbm [shape: f32[128,128], index: 2, kind: input, shape index: {}]
  %s3 = inlined_call_operand.hbm [shape: f32[16,128], index: 3, kind: output, shape index: {}]
  %s4 = sld [smem:[#allocation0]]
  $region34: #{tpu_custom_call.1} parent=0
    _
  %s6 = ssub.s32 1, %s4
  %s7 = scalar_select 0, %s6, %s4
  $region1: #{tpu_custom_call.1} parent=0
    #allocation2 [shape = 'u8[8192]{0}', space=vmem, size = 0x2000, scoped, tag = 'input window, operand 0, single buffered']
    #allocation3 [shape = 's32[1]{0}', space=sflag, size = 0x4, scoped, tag = 'scoped memory for tpu_custom_call.1']
    #allocation4 [shape = 's32[1]{0}', space=sflag, size = 0x4, scoped, tag = 'scoped memory for tpu_custom_call.1']
    #allocation5 [shape = 'u8[131072]{0}', space=vmem, size = 0x20000, scoped, tag = 'input window, operand 1, single buffered']
    #allocation6 [shape = 's32[1]{0}', space=sflag, size = 0x4, scoped, tag = 'scoped memory for tpu_custom_call.1']
    #allocation7 [shape = 'u8[65536]{0}', space=vmem, size = 0x10000, scoped, tag = 'input window, operand 2, single buffered']
    #allocation8 [shape = 'u8[8192]{0}', space=vmem, size = 0x2000, scoped, tag = 'output window, operand 0, single buffered']
    %8 = vsyncpa [#allocation3], 0
    %9 = vsyncpa [#allocation6], 0
    %10 = vsyncpa [#allocation4], 0
    // Predicated region
    $region2: #{tpu_custom_call.1} parent=1 // pred_check
      _
    $region3: #{tpu_custom_call.1} parent=1 // pred_check_branch
      %12 = sbr.rel (0) target = $region5
    $region4: #{tpu_custom_call.1} parent=1 // pred_region
      %s14 = ssub.s32 256, 256
      %15 = vsyncadd [#allocation3], %s14
      %s16 = sshll.u32 [#allocation2], 4
      %s17 = int_to_ptr.vmem [resolvable:$true] %s16
      %22 = dma.hbm_to_vmem [thread:$0]  %s0, 256, %s17, [#allocation3], 128, 128, 8
    $region5: #{tpu_custom_call.1} parent=1 // pred_fallthru
      _
    // Predicated region
    $region6: #{tpu_custom_call.1} parent=1 // pred_check
      _
    $region7: #{tpu_custom_call.1} parent=1 // pred_check_branch
      %24 = sbr.rel (0) target = $region9
    $region8: #{tpu_custom_call.1} parent=1 // pred_region
      %s26 = ssub.s32 4096, 4096
      %27 = vsyncadd [#allocation6], %s26
      %s28 = sshll.u32 [#allocation5], 4
      %s29 = int_to_ptr.vmem [resolvable:$true] %s28
      %34 = dma.hbm_to_vmem [thread:$0]  %s1, 4096, %s29, [#allocation6], 256, 256, 16
    $region9: #{tpu_custom_call.1} parent=1 // pred_fallthru
      _
    // Predicated region
    $region10: #{tpu_custom_call.1} parent=1 // pred_check
      _
    $region11: #{tpu_custom_call.1} parent=1 // pred_check_branch
      %36 = sbr.rel (0) target = $region13
    $region12: #{tpu_custom_call.1} parent=1 // pred_region
      %s38 = ssub.s32 2048, 2048
      %39 = vsyncadd [#allocation6], %s38
      %s40 = sshll.u32 [#allocation7], 4
      %s41 = int_to_ptr.vmem [resolvable:$true] %s40
      %46 = dma.hbm_to_vmem [thread:$0]  %s2, 2048, %s41, [#allocation6], 128, 128, 8
    $region13: #{tpu_custom_call.1} parent=1 // pred_fallthru
      _
    // Predicated region
    $region14: #{tpu_custom_call.1} parent=1 // pred_check
      _
    $region15: #{tpu_custom_call.1} parent=1 // pred_check_branch
      %48 = sbr.rel (0) target = $region17
    $region16: #{tpu_custom_call.1} parent=1 // pred_region
      %49 = dma.done [#allocation3], 256
    $region17: #{tpu_custom_call.1} parent=1 // pred_fallthru
      _
    // Predicated region
    $region18: #{tpu_custom_call.1} parent=1 // pred_check
      _
    $region19: #{tpu_custom_call.1} parent=1 // pred_check_branch
      %51 = sbr.rel (0) target = $region21
    $region20: #{tpu_custom_call.1} parent=1 // pred_region
      %52 = dma.done [#allocation6], 4096
    $region21: #{tpu_custom_call.1} parent=1 // pred_fallthru
      _
    // Predicated region
    $region22: #{tpu_custom_call.1} parent=1 // pred_check
      _
    $region23: #{tpu_custom_call.1} parent=1 // pred_check_branch
      %54 = sbr.rel (0) target = $region25
    $region24: #{tpu_custom_call.1} parent=1 // pred_region
      %55 = dma.done [#allocation6], 2048
    $region25: #{tpu_custom_call.1} parent=1 // pred_fallthru
      _
    %v56 = vld [vmem:[#allocation2] sm:$0xff]
    %v57 = vld [vmem:[#allocation2 + $0x8] sm:$0xff]
    %v58 = vld [vmem:[#allocation5] sm:$0xff]
    %v59 = vld [vmem:[#allocation5 + $0x8] sm:$0xff]
    %v60 = vld [vmem:[#allocation5 + $0x10] sm:$0xff]
    %v61 = vld [vmem:[#allocation5 + $0x18] sm:$0xff]
    %v62 = vld [vmem:[#allocation5 + $0x20] sm:$0xff]
    %v63 = vld [vmem:[#allocation5 + $0x28] sm:$0xff]
    %v64 = vld [vmem:[#allocation5 + $0x30] sm:$0xff]
    %v65 = vld [vmem:[#allocation5 + $0x38] sm:$0xff]
    %v66 = vld [vmem:[#allocation5 + $0x40] sm:$0xff]
    %v67 = vld [vmem:[#allocation5 + $0x48] sm:$0xff]
    %v68 = vld [vmem:[#allocation5 + $0x50] sm:$0xff]
    %v69 = vld [vmem:[#allocation5 + $0x58] sm:$0xff]
    %v70 = vld [vmem:[#allocation5 + $0x60] sm:$0xff]
    %v71 = vld [vmem:[#allocation5 + $0x68] sm:$0xff]
    %v72 = vld [vmem:[#allocation5 + $0x70] sm:$0xff]
    %v73 = vld [vmem:[#allocation5 + $0x78] sm:$0xff]
    %v74 = vld [vmem:[#allocation5 + $0x80] sm:$0xff]
    %v75 = vld [vmem:[#allocation5 + $0x88] sm:$0xff]
    %v76 = vld [vmem:[#allocation5 + $0x90] sm:$0xff]
    %v77 = vld [vmem:[#allocation5 + $0x98] sm:$0xff]
    %v78 = vld [vmem:[#allocation5 + $0xa0] sm:$0xff]
    %v79 = vld [vmem:[#allocation5 + $0xa8] sm:$0xff]
    %v80 = vld [vmem:[#allocation5 + $0xb0] sm:$0xff]
    %v81 = vld [vmem:[#allocation5 + $0xb8] sm:$0xff]
    %v82 = vld [vmem:[#allocation5 + $0xc0] sm:$0xff]
    %v83 = vld [vmem:[#allocation5 + $0xc8] sm:$0xff]
    %v84 = vld [vmem:[#allocation5 + $0xd0] sm:$0xff]
    %v85 = vld [vmem:[#allocation5 + $0xd8] sm:$0xff]
    %v86 = vld [vmem:[#allocation5 + $0xe0] sm:$0xff]
    %v87 = vld [vmem:[#allocation5 + $0xe8] sm:$0xff]
    %v88 = vld [vmem:[#allocation5 + $0xf0] sm:$0xff]
    %v89 = vld [vmem:[#allocation5 + $0xf8] sm:$0xff]
    %90 = vmatprep.subr.mxu0 %v59
    %91 = vmatpush1.msra.mxu0 %v58
    %92 = vmatprep.subr.mxu0 %v61
    %93 = vmatpush1.msra.mxu0 %v60
    %94 = vmatprep.subr.mxu0 %v63
    %95 = vmatpush1.msra.mxu0 %v62
    %96 = vmatprep.subr.mxu0 %v65
    %97 = vmatpush1.msra.mxu0 %v64
    %98 = vmatprep.subr.mxu0 %v67
    %99 = vmatpush1.msra.mxu0 %v66
    %100 = vmatprep.subr.mxu0 %v69
    %101 = vmatpush1.msra.mxu0 %v68
    %102 = vmatprep.subr.mxu0 %v71
    %103 = vmatpush1.msra.mxu0 %v70
    %104 = vmatprep.subr.mxu0 %v73
    %105 = vmatpush1.msra.mxu0 %v72
    %106 = vmatprep.subr.mxu0 %v75
    %107 = vmatpush1.msra.mxu0 %v74
    %108 = vmatprep.subr.mxu0 %v77
    %109 = vmatpush1.msra.mxu0 %v76
    %110 = vmatprep.subr.mxu0 %v79
    %111 = vmatpush1.msra.mxu0 %v78
    %112 = vmatprep.subr.mxu0 %v81
    %113 = vmatpush1.msra.mxu0 %v80
    %114 = vmatprep.subr.mxu0 %v83
    %115 = vmatpush1.msra.mxu0 %v82
    %116 = vmatprep.subr.mxu0 %v85
    %117 = vmatpush1.msra.mxu0 %v84
    %118 = vmatprep.subr.mxu0 %v87
    %119 = vmatpush1.msra.mxu0 %v86
    %120 = vmatprep.subr.mxu0 %v89
    %121 = vmatpush1.msra.mxu0 %v88
    %122 = vmatprep.subr.mxu0 0.0
    %123 = vmatpush1.msra.mxu0 0.0
    %124 = vmatprep.subr.mxu0 0.0
    %125 = vmatpush1.msra.mxu0 0.0
    %126 = vmatprep.subr.mxu0 0.0
    %127 = vmatpush1.msra.mxu0 0.0
    %128 = vmatprep.subr.mxu0 0.0
    %129 = vmatpush1.msra.mxu0 0.0
    %130 = vmatprep.subr.mxu0 0.0
    %131 = vmatpush1.msra.mxu0 0.0
    %132 = vmatprep.subr.mxu0 0.0
    %133 = vmatpush1.msra.mxu0 0.0
    %134 = vmatprep.subr.mxu0 0.0
    %135 = vmatpush1.msra.mxu0 0.0
    %136 = vmatprep.subr.mxu0 0.0
    %137 = vmatpush1.msra.mxu0 0.0
    %138 = vmatprep.subr.mxu0 0.0
    %139 = vmatpush1.msra.mxu0 0.0
    %140 = vmatprep.subr.mxu0 0.0
    %141 = vmatpush1.msra.mxu0 0.0
    %142 = vmatprep.subr.mxu0 0.0
    %143 = vmatpush1.msra.mxu0 0.0
    %144 = vmatprep.subr.mxu0 0.0
    %145 = vmatpush1.msra.mxu0 0.0
    %146 = vmatprep.subr.mxu0 0.0
    %147 = vmatpush1.msra.mxu0 0.0
    %148 = vmatprep.subr.mxu0 0.0
    %149 = vmatpush1.msra.mxu0 0.0
    %150 = vmatprep.subr.mxu0 0.0
    %151 = vmatpush1.msra.mxu0 0.0
    %152 = vmatprep.subr.mxu0 0.0
    %153 = vmatpush1.msra.mxu0 0.0
    %154 = vmatprep.mubr.f32.mxu0 0.0
    %155 = vmatmul.mubr.f32.gmra.mrb[0].mxu0 %v56
    %v156 = vpop.f32.mrb[0].mxu0
    %v157 = vadd.f32 0.0, %v156
    %v158 = vpop.f32.mrb[0].mxu0
    %v159 = vadd.f32 0.0, %v158
    %160 = vmatprep.mubr.f32.mxu0 0.0
    %161 = vmatmul.mubr.f32.gmra.mrb[0].mxu0 %v57
    %v162 = vpop.f32.mrb[0].mxu0
    %v163 = vadd.f32 0.0, %v162
    %v164 = vpop.f32.mrb[0].mxu0
    %v165 = vadd.f32 0.0, %v164
    %166 = vdwg.mxu0
    %v167 = vmax.f32 %v157, 0.0
    %v168 = vmax.f32 %v163, 0.0
    %v169 = vld [vmem:[#allocation7] sm:$0xff]
    %v170 = vld [vmem:[#allocation7 + $0x8] sm:$0xff]
    %v171 = vld [vmem:[#allocation7 + $0x10] sm:$0xff]
    %v172 = vld [vmem:[#allocation7 + $0x18] sm:$0xff]
    %v173 = vld [vmem:[#allocation7 + $0x20] sm:$0xff]
    %v174 = vld [vmem:[#allocation7 + $0x28] sm:$0xff]
    %v175 = vld [vmem:[#allocation7 + $0x30] sm:$0xff]
    %v176 = vld [vmem:[#allocation7 + $0x38] sm:$0xff]
    %v177 = vld [vmem:[#allocation7 + $0x40] sm:$0xff]
    %v178 = vld [vmem:[#allocation7 + $0x48] sm:$0xff]
    %v179 = vld [vmem:[#allocation7 + $0x50] sm:$0xff]
    %v180 = vld [vmem:[#allocation7 + $0x58] sm:$0xff]
    %v181 = vld [vmem:[#allocation7 + $0x60] sm:$0xff]
    %v182 = vld [vmem:[#allocation7 + $0x68] sm:$0xff]
    %v183 = vld [vmem:[#allocation7 + $0x70] sm:$0xff]
    %v184 = vld [vmem:[#allocation7 + $0x78] sm:$0xff]
    %185 = vmatprep.subr.mxu0 0.0
    %186 = vmatpush1.msra.mxu0 %v169
    %187 = vmatprep.subr.mxu0 0.0
    %188 = vmatpush1.msra.mxu0 %v170
    %189 = vmatprep.subr.mxu0 0.0
    %190 = vmatpush1.msra.mxu0 %v171
    %191 = vmatprep.subr.mxu0 0.0
    %192 = vmatpush1.msra.mxu0 %v172
    %193 = vmatprep.subr.mxu0 0.0
    %194 = vmatpush1.msra.mxu0 %v173
    %195 = vmatprep.subr.mxu0 0.0
    %196 = vmatpush1.msra.mxu0 %v174
    %197 = vmatprep.subr.mxu0 0.0
    %198 = vmatpush1.msra.mxu0 %v175
    %199 = vmatprep.subr.mxu0 0.0
    %200 = vmatpush1.msra.mxu0 %v176
    %201 = vmatprep.subr.mxu0 0.0
    %202 = vmatpush1.msra.mxu0 %v177
    %203 = vmatprep.subr.mxu0 0.0
    %204 = vmatpush1.msra.mxu0 %v178
    %205 = vmatprep.subr.mxu0 0.0
    %206 = vmatpush1.msra.mxu0 %v179
    %207 = vmatprep.subr.mxu0 0.0
    %208 = vmatpush1.msra.mxu0 %v180
    %209 = vmatprep.subr.mxu0 0.0
    %210 = vmatpush1.msra.mxu0 %v181
    %211 = vmatprep.subr.mxu0 0.0
    %212 = vmatpush1.msra.mxu0 %v182
    %213 = vmatprep.subr.mxu0 0.0
    %214 = vmatpush1.msra.mxu0 %v183
    %215 = vmatprep.subr.mxu0 0.0
    %216 = vmatpush1.msra.mxu0 %v184
    %217 = vmatprep.subr.mxu0 0.0
    %218 = vmatpush1.msra.mxu0 0.0
    %219 = vmatprep.subr.mxu0 0.0
    %220 = vmatpush1.msra.mxu0 0.0
    %221 = vmatprep.subr.mxu0 0.0
    %222 = vmatpush1.msra.mxu0 0.0
    %223 = vmatprep.subr.mxu0 0.0
    %224 = vmatpush1.msra.mxu0 0.0
    %225 = vmatprep.subr.mxu0 0.0
    %226 = vmatpush1.msra.mxu0 0.0
    %227 = vmatprep.subr.mxu0 0.0
    %228 = vmatpush1.msra.mxu0 0.0
    %229 = vmatprep.subr.mxu0 0.0
    %230 = vmatpush1.msra.mxu0 0.0
    %231 = vmatprep.subr.mxu0 0.0
    %232 = vmatpush1.msra.mxu0 0.0
    %233 = vmatprep.subr.mxu0 0.0
    %234 = vmatpush1.msra.mxu0 0.0
    %235 = vmatprep.subr.mxu0 0.0
    %236 = vmatpush1.msra.mxu0 0.0
    %237 = vmatprep.subr.mxu0 0.0
    %238 = vmatpush1.msra.mxu0 0.0
    %239 = vmatprep.subr.mxu0 0.0
    %240 = vmatpush1.msra.mxu0 0.0
    %241 = vmatprep.subr.mxu0 0.0
    %242 = vmatpush1.msra.mxu0 0.0
    %243 = vmatprep.subr.mxu0 0.0
    %244 = vmatpush1.msra.mxu0 0.0
    %245 = vmatprep.subr.mxu0 0.0
    %246 = vmatpush1.msra.mxu0 0.0
    %247 = vmatprep.subr.mxu0 0.0
    %248 = vmatpush1.msra.mxu0 0.0
    %249 = vmatprep.mubr.f32.mxu0 0.0
    %250 = vmatmul.mubr.f32.gmra.mrb[0].mxu0 %v167
    %v251 = vpop.f32.mrb[0].mxu0
    %v252 = vadd.f32 0.0, %v251
    %v253 = vpop.f32.mrb[0].mxu0
    %254 = vmatprep.mubr.f32.mxu0 0.0
    %255 = vmatmul.mubr.f32.gmra.mrb[0].mxu0 %v168
    %v256 = vpop.f32.mrb[0].mxu0
    %v257 = vadd.f32 0.0, %v256
    %v258 = vpop.f32.mrb[0].mxu0
    %259 = vdwg.mxu0
    %v260 = vadd.f32 %v159, %v252
    %v261 = vadd.f32 %v165, %v257
    %262 = vst [vmem:[#allocation8] sm:$0xff] %v260
    %263 = vst [vmem:[#allocation8 + $0x8] sm:$0xff] %v261
    // Predicated region
    $region26: #{tpu_custom_call.1} parent=1 // pred_check
      _
    $region27: #{tpu_custom_call.1} parent=1 // pred_check_branch
      %265 = sbr.rel (0) target = $region29
    $region28: #{tpu_custom_call.1} parent=1 // pred_region
      %s267 = ssub.s32 256, 256
      %268 = vsyncadd [#allocation4], %s267
      %s269 = sshll.u32 [#allocation8], 4
      %s270 = int_to_ptr.vmem [resolvable:$true] %s269
      %275 = dma.vmem_to_hbm [thread:$0]  %s270, 256, %s3, [#allocation4], 128, 128, 8
    $region29: #{tpu_custom_call.1} parent=1 // pred_fallthru
      _
    // Predicated region
    $region30: #{tpu_custom_call.1} parent=1 // pred_check
      _
    $region31: #{tpu_custom_call.1} parent=1 // pred_check_branch
      %277 = sbr.rel (0) target = $region33
    $region32: #{tpu_custom_call.1} parent=1 // pred_region
      %278 = dma.done [#allocation4], 256
    $region33: #{tpu_custom_call.1} parent=1 // pred_fallthru
      _
    %279 = vsyncpa [#allocation3], 1
    %280 = vsyncpa [#allocation6], 1
    %281 = vsyncpa [#allocation4], 1

</llo_original>
